<compile_context>
chip_gen: v7x
topology: tpu7x:2x2x1
jax: 0.10.0
libtpu: 0.0.40
codegen_flags: <defaults>
</compile_context>

<pallas_src>
import functools
import math

import jax
import jax.numpy as jnp
from jax.experimental import pallas as pl
from jax.experimental.pallas import tpu as pltpu


_LANE_WIDTH = 512        # lane-dense output slab width (multiple of 128)
_MAX_TILE_ROWS = 1024    # rows per grid step (multiple of 8); 1024x512 f32 = 2 MiB


def _round_up(x, m):
    return (x + m - 1) // m * m


def _make_sum_kernel(semiring: str, num_children: int):
    """Kernel over one (tm, C) lane-dense tile of the flattened weights."""

    def kernel(scale_ref, bias_ref, w_ref, o_ref):
        # scale_ref / bias_ref: (K,) scalars in SMEM
        # w_ref / o_ref: (tm, C) tiles in VMEM
        w = w_ref[...].astype(jnp.float32)

        if semiring == "prob":
            # sum_k (a_k * w + b_k)  ==  (sum_k a_k) * w + sum_k b_k
            a_sum = scale_ref[0]
            b_sum = bias_ref[0]
            for k in range(1, num_children):
                a_sum = a_sum + scale_ref[k]
                b_sum = b_sum + bias_ref[k]
            o_ref[...] = (a_sum * w + b_sum).astype(o_ref.dtype)
        else:
            # logsumexp_k (a_k * w + b_k), two streaming passes, nothing stacked.
            # Hoist scalar reads once (they broadcast into the FMAs below).
            a = [scale_ref[k] for k in range(num_children)]
            b = [bias_ref[k] for k in range(num_children)]

            # Pass 1: running max.
            m = a[0] * w + b[0]
            for k in range(1, num_children):
                m = jnp.maximum(m, a[k] * w + b[k])

            # Pass 2: sum of exp, recomputing the affine (1 VPU FMA + EUP exp).
            s = jnp.exp(a[0] * w + b[0] - m)
            for k in range(1, num_children):
                s = s + jnp.exp(a[k] * w + b[k] - m)

            o_ref[...] = (m + jnp.log(s)).astype(o_ref.dtype)

    return kernel


@functools.partial(jax.jit, static_argnames=("semiring",))
def sum_module_forward(weights, scales, biases, *, semiring="log"):
    """weights: any shape; scales/biases: (K,) per-child affine params."""
    orig_shape = weights.shape
    N = math.prod(orig_shape)
    K = scales.shape[0]

    # Lane-dense slab: last dim = _LANE_WIDTH (multiple of 128).
    C = _LANE_WIDTH
    rows = -(-N // C)                              # ceil
    tm = min(_MAX_TILE_ROWS, _round_up(rows, 8))   # row tile, multiple of 8
    rows_pad = _round_up(rows, tm)
    pad = rows_pad * C - N

    w_flat = weights.reshape(-1)
    if pad:
        w_flat = jnp.pad(w_flat, (0, pad))         # zero-pad; pad is sliced off below
    w2 = w_flat.reshape(rows_pad, C)

    grid = (rows_pad // tm,)

    out2 = pl.pallas_call(
        _make_sum_kernel(semiring, K),
        out_shape=jax.ShapeDtypeStruct((rows_pad, C), weights.dtype),
        grid_spec=pltpu.PrefetchScalarGridSpec(
            num_scalar_prefetch=0,
            grid=grid,
            in_specs=[
                pl.BlockSpec(memory_space=pltpu.MemorySpace.SMEM),  # scales (K,)
                pl.BlockSpec(memory_space=pltpu.MemorySpace.SMEM),  # biases (K,)
                pl.BlockSpec((tm, C), lambda i: (i, 0)),            # weights tile
            ],
            out_specs=pl.BlockSpec((tm, C), lambda i: (i, 0)),
        ),
        compiler_params=pltpu.CompilerParams(
            dimension_semantics=("parallel",),
        ),
    )(scales, biases, w2)

    return out2.reshape(-1)[:N].reshape(orig_shape)


def _reference(weights, scales, biases, semiring):
    # Pure-JAX reference mirroring the PyTorch forward (stack + reduce on dim=-1).
    children = [scales[k] * weights + biases[k] for k in range(scales.shape[0])]
    stacked = jnp.stack(children, axis=-1)
    if semiring == "prob":
        return jnp.sum(stacked, axis=-1)
    return jax.scipy.special.logsumexp(stacked, axis=-1)


if __name__ == "__main__":
    key = jax.random.PRNGKey(0)
    k_w, k_s, k_b = jax.random.split(key, 3)

    B, T, D = 2, 8, 32   # batch, seq, hidden
    K = 4                # number of children modules

    weights = jax.random.normal(k_w, (B, T, D), dtype=jnp.float32)
    scales = jax.random.normal(k_s, (K,), dtype=jnp.float32)
    biases = 0.1 * jax.random.normal(k_b, (K,), dtype=jnp.float32)

    ok = True
    for semiring in ("log", "prob"):
        out = sum_module_forward(weights, scales, biases, semiring=semiring)
        out = jax.block_until_ready(out)
        ref = _reference(weights, scales, biases, semiring)
        if not jnp.allclose(out, ref, atol=1e-5, rtol=1e-5):
            ok = False
            print(f"MISMATCH for semiring={semiring}: "
                  f"max abs err {jnp.max(jnp.abs(out - ref))}")

    if ok:
        print("KERNEL_OK")
</pallas_src>

<mosaic_0001>
module attributes {stable_mosaic.version = 11 : i64} {
  func.func @kernel(%arg0: i32, %arg1: memref<4xf32, #tpu.memory_space<smem>>, %arg2: memref<4xf32, #tpu.memory_space<smem>>, %arg3: memref<8x512xf32, #tpu.memory_space<vmem>>, %arg4: memref<8x512xf32, #tpu.memory_space<vmem>>) attributes {dimension_semantics = [#tpu.dimension_semantics<parallel>], iteration_bounds = array<i64: 1>, scalar_prefetch = 0 : i64, scratch_operands = 0 : i64, tpu.core_type = #tpu.core_type<tc>, window_params = [{transform_indices = @transform_0, window_bounds = array<i64: 4>}, {transform_indices = @transform_1, window_bounds = array<i64: 4>}, {transform_indices = @transform_2, window_bounds = array<i64: 8, 512>}, {transform_indices = @transform_3, window_bounds = array<i64: 8, 512>}]} {
    %c0 = arith.constant 0 : index
    %c0_0 = arith.constant 0 : index
    %0 = vector.load %arg3[%c0, %c0_0] : memref<8x512xf32, #tpu.memory_space<vmem>>, vector<8x512xf32>
    %c0_1 = arith.constant 0 : index
    %1 = memref.load %arg1[%c0_1] : memref<4xf32, #tpu.memory_space<smem>>
    %c1 = arith.constant 1 : index
    %2 = memref.load %arg1[%c1] : memref<4xf32, #tpu.memory_space<smem>>
    %c2 = arith.constant 2 : index
    %3 = memref.load %arg1[%c2] : memref<4xf32, #tpu.memory_space<smem>>
    %c3 = arith.constant 3 : index
    %4 = memref.load %arg1[%c3] : memref<4xf32, #tpu.memory_space<smem>>
    %c0_2 = arith.constant 0 : index
    %5 = memref.load %arg2[%c0_2] : memref<4xf32, #tpu.memory_space<smem>>
    %c1_3 = arith.constant 1 : index
    %6 = memref.load %arg2[%c1_3] : memref<4xf32, #tpu.memory_space<smem>>
    %c2_4 = arith.constant 2 : index
    %7 = memref.load %arg2[%c2_4] : memref<4xf32, #tpu.memory_space<smem>>
    %c3_5 = arith.constant 3 : index
    %8 = memref.load %arg2[%c3_5] : memref<4xf32, #tpu.memory_space<smem>>
    %9 = vector.broadcast %1 : f32 to vector<8x512xf32>
    %10 = arith.mulf %9, %0 : vector<8x512xf32>
    %11 = vector.broadcast %5 : f32 to vector<8x512xf32>
    %12 = arith.addf %10, %11 : vector<8x512xf32>
    %13 = vector.broadcast %2 : f32 to vector<8x512xf32>
    %14 = arith.mulf %13, %0 : vector<8x512xf32>
    %15 = vector.broadcast %6 : f32 to vector<8x512xf32>
    %16 = arith.addf %14, %15 : vector<8x512xf32>
    %17 = arith.maximumf %12, %16 : vector<8x512xf32>
    %18 = vector.broadcast %3 : f32 to vector<8x512xf32>
    %19 = arith.mulf %18, %0 : vector<8x512xf32>
    %20 = vector.broadcast %7 : f32 to vector<8x512xf32>
    %21 = arith.addf %19, %20 : vector<8x512xf32>
    %22 = arith.maximumf %17, %21 : vector<8x512xf32>
    %23 = vector.broadcast %4 : f32 to vector<8x512xf32>
    %24 = arith.mulf %23, %0 : vector<8x512xf32>
    %25 = vector.broadcast %8 : f32 to vector<8x512xf32>
    %26 = arith.addf %24, %25 : vector<8x512xf32>
    %27 = arith.maximumf %22, %26 : vector<8x512xf32>
    %28 = vector.broadcast %1 : f32 to vector<8x512xf32>
    %29 = arith.mulf %28, %0 : vector<8x512xf32>
    %30 = vector.broadcast %5 : f32 to vector<8x512xf32>
    %31 = arith.addf %29, %30 : vector<8x512xf32>
    %32 = arith.subf %31, %27 : vector<8x512xf32>
    %33 = math.exp %32 : vector<8x512xf32>
    %34 = vector.broadcast %2 : f32 to vector<8x512xf32>
    %35 = arith.mulf %34, %0 : vector<8x512xf32>
    %36 = vector.broadcast %6 : f32 to vector<8x512xf32>
    %37 = arith.addf %35, %36 : vector<8x512xf32>
    %38 = arith.subf %37, %27 : vector<8x512xf32>
    %39 = math.exp %38 : vector<8x512xf32>
    %40 = arith.addf %33, %39 : vector<8x512xf32>
    %41 = vector.broadcast %3 : f32 to vector<8x512xf32>
    %42 = arith.mulf %41, %0 : vector<8x512xf32>
    %43 = vector.broadcast %7 : f32 to vector<8x512xf32>
    %44 = arith.addf %42, %43 : vector<8x512xf32>
    %45 = arith.subf %44, %27 : vector<8x512xf32>
    %46 = math.exp %45 : vector<8x512xf32>
    %47 = arith.addf %40, %46 : vector<8x512xf32>
    %48 = vector.broadcast %4 : f32 to vector<8x512xf32>
    %49 = arith.mulf %48, %0 : vector<8x512xf32>
    %50 = vector.broadcast %8 : f32 to vector<8x512xf32>
    %51 = arith.addf %49, %50 : vector<8x512xf32>
    %52 = arith.subf %51, %27 : vector<8x512xf32>
    %53 = math.exp %52 : vector<8x512xf32>
    %54 = arith.addf %47, %53 : vector<8x512xf32>
    %55 = math.log %54 : vector<8x512xf32>
    %56 = arith.addf %27, %55 : vector<8x512xf32>
    %c0_6 = arith.constant 0 : index
    %c0_7 = arith.constant 0 : index
    %57 = vector.load %arg4[%c0_6, %c0_7] : memref<8x512xf32, #tpu.memory_space<vmem>>, vector<8x512xf32>
    tpu.vector_store %arg4[%c0_6, %c0_7], %56 {strides = array<i32>} : memref<8x512xf32, #tpu.memory_space<vmem>>, vector<8x512xf32>,
    return
  }
  func.func @transform_0(%arg0: i32) -> i32 {
    %c0_i32 = arith.constant 0 : i32
    %c0_i32_0 = arith.constant 0 : i32
    return %c0_i32 : i32
  }
  func.func @transform_1(%arg0: i32) -> i32 {
    %c0_i32 = arith.constant 0 : i32
    %c0_i32_0 = arith.constant 0 : i32
    return %c0_i32 : i32
  }
  func.func @transform_2(%arg0: i32) -> (i32, i32) {
    %c0_i32 = arith.constant 0 : i32
    %c0_i32_0 = arith.constant 0 : i32
    return %arg0, %c0_i32 : i32, i32
  }
  func.func @transform_3(%arg0: i32) -> (i32, i32) {
    %c0_i32 = arith.constant 0 : i32
    %c0_i32_0 = arith.constant 0 : i32
    return %arg0, %c0_i32 : i32, i32
  }
}

</mosaic_0001>

<llo_original>
// kernel: sum_module_forward.1
$region0: #{sum_module_forward.1}
  #allocation0 [shape = 'u32[]', space=smem, size = 0x4, offset = 0x4, fixed_abs, tag = 'smem constant byte address 0x4 - core index']
  #allocation1 [shape = 'u32[144,128]{1,0:T(1,128)}', space=vmem, size = 0x12000, scoped, tag = 'internal scratch']
  %s0 = inlined_call_operand.vmem [shape: f32[4], index: 0, kind: input, shape index: {}]
  %s1 = inlined_call_operand.vmem [shape: f32[4], index: 1, kind: input, shape index: {}]
  %s2 = inlined_call_operand.vmem [shape: f32[8,512], index: 2, kind: input, shape index: {}]
  %s3 = inlined_call_operand.vmem [shape: f32[8,512], index: 3, kind: output, shape index: {}]
  %s4 = sld [smem:[#allocation0]]
  $region30: #{sum_module_forward.1} parent=0
    _
  %s6 = ssub.s32 1, %s4
  %s7 = scalar_select 0, %s6, %s4
  $region1: #{sum_module_forward.1} parent=0
    #allocation2 [shape = 'u8[512]{0}', space=smem, size = 0x200, scoped, tag = 'input window, operand 0, single buffered']
    #allocation3 [shape = 's32[1]{0}', space=sflag, size = 0x4, scoped, tag = 'scoped memory for sum_module_forward.1']
    #allocation4 [shape = 'u8[512]{0}', space=smem, size = 0x200, scoped, tag = 'input window, operand 1, single buffered']
    #allocation5 [shape = 's32[1]{0}', space=sflag, size = 0x4, scoped, tag = 'scoped memory for sum_module_forward.1']
    %8 = vsyncpa [#allocation3], 0
    %9 = vsyncpa [#allocation5], 0
    // Predicated region
    $region2: #{sum_module_forward.1} parent=1 // pred_check
      _
    $region3: #{sum_module_forward.1} parent=1 // pred_check_branch
      %11 = sbr.rel (0) target = $region5
    $region4: #{sum_module_forward.1} parent=1 // pred_region
      %s13 = ssub.s32 16, 16
      %14 = vsyncadd [#allocation3], %s13
      %s16 = sshll.u32 %s0, 4
      %s17 = int_to_ptr.vmem [resolvable:$true] %s16
      %19 = dma.vmem_to_smem %s17, 16, [#allocation2], [#allocation3]
    $region5: #{sum_module_forward.1} parent=1 // pred_fallthru
      _
    // Predicated region
    $region6: #{sum_module_forward.1} parent=1 // pred_check
      _
    $region7: #{sum_module_forward.1} parent=1 // pred_check_branch
      %21 = sbr.rel (0) target = $region9
    $region8: #{sum_module_forward.1} parent=1 // pred_region
      %s23 = ssub.s32 16, 16
      %24 = vsyncadd [#allocation5], %s23
      %s26 = sshll.u32 %s1, 4
      %s27 = int_to_ptr.vmem [resolvable:$true] %s26
      %29 = dma.vmem_to_smem %s27, 16, [#allocation4], [#allocation5]
    $region9: #{sum_module_forward.1} parent=1 // pred_fallthru
      _
    // Predicated region
    $region10: #{sum_module_forward.1} parent=1 // pred_check
      _
    $region11: #{sum_module_forward.1} parent=1 // pred_check_branch
      %31 = sbr.rel (0) target = $region13
    $region12: #{sum_module_forward.1} parent=1 // pred_region
      _
    $region13: #{sum_module_forward.1} parent=1 // pred_fallthru
      _
    // Predicated region
    $region14: #{sum_module_forward.1} parent=1 // pred_check
      _
    $region15: #{sum_module_forward.1} parent=1 // pred_check_branch
      %33 = sbr.rel (0) target = $region17
    $region16: #{sum_module_forward.1} parent=1 // pred_region
      %34 = dma.done [#allocation3], 16
    $region17: #{sum_module_forward.1} parent=1 // pred_fallthru
      _
    // Predicated region
    $region18: #{sum_module_forward.1} parent=1 // pred_check
      _
    $region19: #{sum_module_forward.1} parent=1 // pred_check_branch
      %36 = sbr.rel (0) target = $region21
    $region20: #{sum_module_forward.1} parent=1 // pred_region
      %37 = dma.done [#allocation5], 16
    $region21: #{sum_module_forward.1} parent=1 // pred_fallthru
      _
    %38 = sfence
    %v39 = vld [vmem:[%s2] sm:$0xff]
    %v40 = vld [vmem:[%s2 + $0x8] sm:$0xff]
    %v41 = vld [vmem:[%s2 + $0x10] sm:$0xff]
    %v42 = vld [vmem:[%s2 + $0x18] sm:$0xff]
    %s43 = sld [smem:[#allocation2]]
    %s44 = sld [smem:[#allocation2 + $0x1]]
    %s45 = sld [smem:[#allocation2 + $0x2]]
    %s46 = sld [smem:[#allocation2 + $0x3]]
    %s47 = sld [smem:[#allocation4]]
    %s48 = sld [smem:[#allocation4 + $0x1]]
    %s49 = sld [smem:[#allocation4 + $0x2]]
    %s50 = sld [smem:[#allocation4 + $0x3]]
    %v51 = vstv %s43
    %v52 = vmul.f32 %v51, %v39
    %v53 = vmul.f32 %v51, %v40
    %v54 = vmul.f32 %v51, %v41
    %v55 = vmul.f32 %v51, %v42
    %v56 = vstv %s47
    %v57 = vadd.f32 %v52, %v56
    %v58 = vadd.f32 %v53, %v56
    %v59 = vadd.f32 %v54, %v56
    %v60 = vadd.f32 %v55, %v56
    %v61 = vstv %s44
    %v62 = vmul.f32 %v61, %v39
    %v63 = vmul.f32 %v61, %v40
    %v64 = vmul.f32 %v61, %v41
    %v65 = vmul.f32 %v61, %v42
    %v66 = vstv %s48
    %v67 = vadd.f32 %v62, %v66
    %v68 = vadd.f32 %v63, %v66
    %v69 = vadd.f32 %v64, %v66
    %v70 = vadd.f32 %v65, %v66
    %v71 = vmax.f32 %v57, %v67
    %v72 = vmax.f32 %v58, %v68
    %v73 = vmax.f32 %v59, %v69
    %v74 = vmax.f32 %v60, %v70
    %v75 = vstv %s45
    %v76 = vmul.f32 %v75, %v39
    %v77 = vmul.f32 %v75, %v40
    %v78 = vmul.f32 %v75, %v41
    %v79 = vmul.f32 %v75, %v42
    %v80 = vstv %s49
    %v81 = vadd.f32 %v76, %v80
    %v82 = vadd.f32 %v77, %v80
    %v83 = vadd.f32 %v78, %v80
    %v84 = vadd.f32 %v79, %v80
    %v85 = vmax.f32 %v71, %v81
    %v86 = vmax.f32 %v72, %v82
    %v87 = vmax.f32 %v73, %v83
    %v88 = vmax.f32 %v74, %v84
    %v89 = vstv %s46
    %v90 = vmul.f32 %v89, %v39
    %v91 = vmul.f32 %v89, %v40
    %v92 = vmul.f32 %v89, %v41
    %v93 = vmul.f32 %v89, %v42
    %v94 = vstv %s50
    %v95 = vadd.f32 %v90, %v94
    %v96 = vadd.f32 %v91, %v94
    %v97 = vadd.f32 %v92, %v94
    %v98 = vadd.f32 %v93, %v94
    %v99 = vmax.f32 %v85, %v95
    %v100 = vmax.f32 %v86, %v96
    %v101 = vmax.f32 %v87, %v97
    %v102 = vmax.f32 %v88, %v98
    %v103 = vsub.f32 %v57, %v99
    %v104 = vsub.f32 %v58, %v100
    %v105 = vsub.f32 %v59, %v101
    %v106 = vsub.f32 %v60, %v102
    %v107 = vmul.f32 %v103, 1.442695
    %v108 = vpow.pop %v107
    %v109 = vmul.f32 %v104, 1.442695
    %v110 = vpow.pop %v109
    %v111 = vmul.f32 %v105, 1.442695
    %v112 = vpow.pop %v111
    %v113 = vmul.f32 %v106, 1.442695
    %v114 = vpow.pop %v113
    %v115 = vsub.f32 %v67, %v99
    %v116 = vsub.f32 %v68, %v100
    %v117 = vsub.f32 %v69, %v101
    %v118 = vsub.f32 %v70, %v102
    %v119 = vmul.f32 %v115, 1.442695
    %v120 = vpow.pop %v119
    %v121 = vmul.f32 %v116, 1.442695
    %v122 = vpow.pop %v121
    %v123 = vmul.f32 %v117, 1.442695
    %v124 = vpow.pop %v123
    %v125 = vmul.f32 %v118, 1.442695
    %v126 = vpow.pop %v125
    %v127 = vadd.f32 %v108, %v120
    %v128 = vadd.f32 %v110, %v122
    %v129 = vadd.f32 %v112, %v124
    %v130 = vadd.f32 %v114, %v126
    %v131 = vsub.f32 %v81, %v99
    %v132 = vsub.f32 %v82, %v100
    %v133 = vsub.f32 %v83, %v101
    %v134 = vsub.f32 %v84, %v102
    %v135 = vmul.f32 %v131, 1.442695
    %v136 = vpow.pop %v135
    %v137 = vmul.f32 %v132, 1.442695
    %v138 = vpow.pop %v137
    %v139 = vmul.f32 %v133, 1.442695
    %v140 = vpow.pop %v139
    %v141 = vmul.f32 %v134, 1.442695
    %v142 = vpow.pop %v141
    %v143 = vadd.f32 %v127, %v136
    %v144 = vadd.f32 %v128, %v138
    %v145 = vadd.f32 %v129, %v140
    %v146 = vadd.f32 %v130, %v142
    %v147 = vsub.f32 %v95, %v99
    %v148 = vsub.f32 %v96, %v100
    %v149 = vsub.f32 %v97, %v101
    %v150 = vsub.f32 %v98, %v102
    %v151 = vmul.f32 %v147, 1.442695
    %v152 = vpow.pop %v151
    %v153 = vmul.f32 %v148, 1.442695
    %v154 = vpow.pop %v153
    %v155 = vmul.f32 %v149, 1.442695
    %v156 = vpow.pop %v155
    %v157 = vmul.f32 %v150, 1.442695
    %v158 = vpow.pop %v157
    %v159 = vadd.f32 %v143, %v152
    %v160 = vadd.f32 %v144, %v154
    %v161 = vadd.f32 %v145, %v156
    %v162 = vadd.f32 %v146, %v158
    %v163 = vlog2.pop %v159
    %v164 = vmul.f32 %v163, 0.6931472
    %v165 = vlog2.pop %v160
    %v166 = vmul.f32 %v165, 0.6931472
    %v167 = vlog2.pop %v161
    %v168 = vmul.f32 %v167, 0.6931472
    %v169 = vlog2.pop %v162
    %v170 = vmul.f32 %v169, 0.6931472
    %v171 = vadd.f32 %v99, %v164
    %v172 = vadd.f32 %v100, %v166
    %v173 = vadd.f32 %v101, %v168
    %v174 = vadd.f32 %v102, %v170
    %175 = vst [vmem:[%s3] sm:$0xff] %v171
    %176 = vst [vmem:[%s3 + $0x8] sm:$0xff] %v172
    %177 = vst [vmem:[%s3 + $0x10] sm:$0xff] %v173
    %178 = vst [vmem:[%s3 + $0x18] sm:$0xff] %v174
    // Predicated region
    $region22: #{sum_module_forward.1} parent=1 // pred_check
      _
    $region23: #{sum_module_forward.1} parent=1 // pred_check_branch
      %180 = sbr.rel (0) target = $region25
    $region24: #{sum_module_forward.1} parent=1 // pred_region
      _
    $region25: #{sum_module_forward.1} parent=1 // pred_fallthru
      _
    // Predicated region
    $region26: #{sum_module_forward.1} parent=1 // pred_check
      _
    $region27: #{sum_module_forward.1} parent=1 // pred_check_branch
      %182 = sbr.rel (0) target = $region29
    $region28: #{sum_module_forward.1} parent=1 // pred_region
      _
    $region29: #{sum_module_forward.1} parent=1 // pred_fallthru
      _
    %183 = vsyncpa [#allocation3], 1
    %184 = vsyncpa [#allocation5], 1

</llo_original>
